<compile_context>
chip_gen: v7x
topology: tpu7x:2x2x1
jax: 0.10.0
libtpu: 0.0.40
codegen_flags: <defaults>
</compile_context>

<pallas_src>
import jax
import jax.numpy as jnp
from jax.experimental import pallas as pl
from jax.experimental.pallas import tpu as pltpu


def _round_up(x, m):
    return ((x + m - 1) // m) * m


def _cdiv(a, b):
    return -(-a // b)


def _vmem_budget_bytes():
    """Per-generation VMEM budget: ~48 MiB on v7x (64 MiB phys), 96 MiB on v5e/v6e."""
    phys = 128 * 1024 * 1024
    try:
        info = pltpu.get_tpu_info()
        phys = int(getattr(info, "vmem_capacity_bytes", phys)) or phys
    except Exception:
        pass
    return min((phys * 3) // 4, 96 * 1024 * 1024)


# ----------------------------- kernels ------------------------------------ #

def _linear_relu_kernel_single_k(x_ref, w_ref, b_ref, o_ref):
    # Whole K fits in one tile: fused matmul + bias + ReLU straight to output.
    acc = jnp.dot(x_ref[...], w_ref[...], preferred_element_type=jnp.float32)
    o_ref[...] = jnp.maximum(acc + b_ref[...].astype(jnp.float32), 0.0).astype(o_ref.dtype)


def _linear_relu_kernel_multi_k(x_ref, w_ref, b_ref, o_ref, acc_ref):
    # K is the innermost ("arbitrary") grid axis; acc_ref persists across it.
    k = pl.program_id(2)

    @pl.when(k == 0)
    def _():
        acc_ref[...] = jnp.zeros_like(acc_ref)

    acc_ref[...] += jnp.dot(x_ref[...], w_ref[...], preferred_element_type=jnp.float32)

    @pl.when(k == pl.num_programs(2) - 1)
    def _():
        o_ref[...] = jnp.maximum(
            acc_ref[...] + b_ref[...].astype(jnp.float32), 0.0
        ).astype(o_ref.dtype)


# ----------------------------- wrapper ------------------------------------ #

def prepare_linear_params(weight, bias):
    """One-time conversion of PyTorch nn.Linear params.

    weight: (hidden_dim, input_dim) -> (input_dim, hidden_dim)   [K, N]
    bias:   (hidden_dim,)           -> (1, hidden_dim)           [1, N]

    Do this once at parameter-load time; the transpose amortizes to zero.
    """
    weight = jnp.asarray(weight)
    bias = jnp.asarray(bias)
    return weight.T, bias.reshape(1, -1)


def _weight_block_spec(tk, tn, index_map, deep_buffer):
    if deep_buffer:
        try:
            # Deeper buffering on the streamed weight hides more DMA latency in
            # the memory-bound small-batch regime (biggest win on v5e).
            return pl.BlockSpec((tk, tn), index_map, pipeline_mode=pl.Buffered(3))
        except (TypeError, AttributeError):
            pass
    return pl.BlockSpec((tk, tn), index_map)


def source_input_layer(x, weight_t, bias2d, *, compute_dtype=None,
                       tm_max=512, tn_max=512, tk_max=2048):
    """relu(x @ weight_t + bias) with weight_t / bias2d from prepare_linear_params."""
    M, K = x.shape
    K2, N = weight_t.shape
    assert K == K2, (x.shape, weight_t.shape)
    assert bias2d.shape == (1, N), bias2d.shape

    out_dtype = x.dtype
    if compute_dtype is not None:
        # e.g. jnp.bfloat16: halves HBM bytes + VMEM footprint, full-rate MXU;
        # accumulation stays f32 inside the kernel.
        x = x.astype(compute_dtype)
        weight_t = weight_t.astype(compute_dtype)
    op_bytes = jnp.dtype(x.dtype).itemsize
    out_bytes = jnp.dtype(out_dtype).itemsize
    sub = 8 if op_bytes >= 4 else (16 if op_bytes == 2 else 32)  # sublane packing

    # ---- tile selection --------------------------------------------------
    tm = min(_round_up(tm_max, sub), _round_up(M, sub))
    tn = N if N < 128 else min(_round_up(tn_max, 128), _round_up(N, 128))
    if K <= tk_max:
        tk, k_pad, nk = K, K, 1              # full-depth contraction, no padding
    else:
        nk = _cdiv(K, tk_max)
        tk = _round_up(_cdiv(K, nk), 128)    # minimize K padding while keeping
        k_pad = nk * tk                      # every K block fully zero-filled

    # Keep double-buffered tiles (+ f32 accumulator) inside the VMEM budget
    # (only triggers if the caller raises the caps well beyond the defaults).
    budget = _vmem_budget_bytes()
    tile_budget = (budget * 3) // 4

    def _footprint(tm_, tn_):
        bufs = 2 * (tm_ * tk + tk * tn_ + tn_) * op_bytes   # x, w, bias (dbl-buf)
        outs = 2 * tm_ * tn_ * out_bytes                    # output (dbl-buf)
        acc = tm_ * tn_ * 4 if nk > 1 else 0                # f32 accumulator
        return bufs + outs + acc

    while _footprint(tm, tn) > tile_budget:
        if tm >= tn and tm > 2 * sub:
            tm = max(sub, _round_up(tm // 2, sub))
        elif tn > 128:
            tn = max(128, _round_up(tn // 2, 128))
        else:
            break

    m_blocks = _cdiv(M, tm)
    n_blocks = _cdiv(N, tn)

    # v7x has 2 TensorCores sharded over the "parallel" grid axes: make sure at
    # least one of them has >= 2 blocks when the shape allows a lane-dense split.
    if m_blocks == 1 and n_blocks == 1 and N >= 256:
        tn = _round_up(_cdiv(N, 2), 128)
        n_blocks = _cdiv(N, tn)

    # ---- zero-pad the contraction axis only (zeros are matmul-neutral) ----
    if k_pad != K:
        x = jnp.pad(x, ((0, 0), (0, k_pad - K)))
        weight_t = jnp.pad(weight_t, ((0, k_pad - K), (0, 0)))

    # ---- advisory cost (accounts for operand re-streaming) ----------------
    cost = pl.CostEstimate(
        flops=2 * M * N * k_pad,
        transcendentals=0,
        bytes_accessed=(op_bytes * (M * k_pad * n_blocks + k_pad * N * m_blocks)
                        + 4 * N + out_bytes * M * N),
    )

    deep_w_buffer = (nk >= 3 and m_blocks == 1)   # small-M inference regime

    if nk == 1:
        grid = (m_blocks, n_blocks)
        in_specs = [
            pl.BlockSpec((tm, tk), lambda i, j: (i, 0)),
            _weight_block_spec(tk, tn, lambda i, j: (0, j), deep_w_buffer),
            pl.BlockSpec((1, tn), lambda i, j: (0, j)),
        ]
        out_spec = pl.BlockSpec((tm, tn), lambda i, j: (i, j))
        kernel = _linear_relu_kernel_single_k
        scratch = []
        dims = ("parallel", "parallel")
    else:
        grid = (m_blocks, n_blocks, nk)
        in_specs = [
            pl.BlockSpec((tm, tk), lambda i, j, k: (i, k)),
            _weight_block_spec(tk, tn, lambda i, j, k: (k, j), deep_w_buffer),
            pl.BlockSpec((1, tn), lambda i, j, k: (0, j)),
        ]
        out_spec = pl.BlockSpec((tm, tn), lambda i, j, k: (i, j))
        kernel = _linear_relu_kernel_multi_k
        scratch = [pltpu.VMEM((tm, tn), jnp.float32)]
        dims = ("parallel", "parallel", "arbitrary")

    return pl.pallas_call(
        kernel,
        out_shape=jax.ShapeDtypeStruct((M, N), out_dtype),
        grid_spec=pltpu.PrefetchScalarGridSpec(
            num_scalar_prefetch=0,
            grid=grid,
            in_specs=in_specs,
            out_specs=out_spec,
            scratch_shapes=scratch,
        ),
        compiler_params=pltpu.CompilerParams(
            dimension_semantics=dims,
            vmem_limit_bytes=budget,
        ),
        cost_estimate=cost,
    )(x, weight_t, bias2d)


# ------------------------------- demo -------------------------------------- #

if __name__ == "__main__":
    key = jax.random.PRNGKey(0)
    keys = jax.random.split(key, 9)

    def make_case(kx, kw, kb, batch, input_dim, hidden_dim):
        x = jax.random.normal(kx, (batch, input_dim), dtype=jnp.float32)
        bound = float(input_dim) ** -0.5
        w = jax.random.uniform(kw, (hidden_dim, input_dim),
                               minval=-bound, maxval=bound, dtype=jnp.float32)
        b = jax.random.uniform(kb, (hidden_dim,),
                               minval=-0.5, maxval=0.5, dtype=jnp.float32)
        return x, w, b

    def reference(x, w, b):
        y = jnp.dot(x, w.T, precision=jax.lax.Precision.HIGHEST) + b
        return jnp.maximum(y, 0.0)

    # 1) Module demo shape: batch=8, input_dim=16, hidden_dim=32 (single-K fast path).
    x1, w1, b1 = make_case(keys[0], keys[1], keys[2], 8, 16, 32)
    wt1, bb1 = prepare_linear_params(w1, b1)   # one-time, at parameter-load
    out1 = jax.block_until_ready(source_input_layer(x1, wt1, bb1))
    assert out1.shape == (8, 32)
    assert jnp.allclose(out1, reference(x1, w1, b1), atol=2e-2, rtol=2e-2)

    # 2) Multi-K accumulator path, ragged N edge, deep weight buffering (f32).
    x2, w2, b2 = make_case(keys[3], keys[4], keys[5], 24, 384, 200)
    wt2, bb2 = prepare_linear_params(w2, b2)
    out2 = jax.block_until_ready(
        source_input_layer(x2, wt2, bb2, tk_max=128, tn_max=128))
    assert out2.shape == (24, 200)
    assert jnp.allclose(out2, reference(x2, w2, b2), atol=2e-2, rtol=2e-2)

    # 3) bf16 operands with f32 accumulation (multi-K path).
    x3, w3, b3 = make_case(keys[6], keys[7], keys[8], 32, 256, 128)
    wt3, bb3 = prepare_linear_params(w3, b3)
    out3 = jax.block_until_ready(
        source_input_layer(x3, wt3, bb3, compute_dtype=jnp.bfloat16, tk_max=128))
    assert out3.shape == (32, 128)
    assert jnp.allclose(out3, reference(x3, w3, b3), atol=4e-2, rtol=4e-2)

    print("KERNEL_OK")
</pallas_src>

<mosaic_0001>
module attributes {stable_mosaic.version = 11 : i64} {
  func.func @_linear_relu_kernel_single_k(%arg0: i32, %arg1: i32, %arg2: memref<8x16xf32, #tpu.memory_space<vmem>>, %arg3: memref<16x32xf32, #tpu.memory_space<vmem>>, %arg4: memref<1x32xf32, #tpu.memory_space<vmem>>, %arg5: memref<8x32xf32, #tpu.memory_space<vmem>>) attributes {dimension_semantics = [#tpu.dimension_semantics<parallel>, #tpu.dimension_semantics<parallel>], iteration_bounds = array<i64: 1, 1>, scalar_prefetch = 0 : i64, scratch_operands = 0 : i64, tpu.core_type = #tpu.core_type<tc>, window_params = [{transform_indices = @transform_0, window_bounds = array<i64: 8, 16>}, {transform_indices = @transform_1, window_bounds = array<i64: 16, 32>}, {transform_indices = @transform_2, window_bounds = array<i64: 1, 32>}, {transform_indices = @transform_3, window_bounds = array<i64: 8, 32>}]} {
    %c0 = arith.constant 0 : index
    %c0_0 = arith.constant 0 : index
    %0 = vector.load %arg2[%c0, %c0_0] : memref<8x16xf32, #tpu.memory_space<vmem>>, vector<8x16xf32>
    %c0_1 = arith.constant 0 : index
    %c0_2 = arith.constant 0 : index
    %1 = vector.load %arg3[%c0_1, %c0_2] : memref<16x32xf32, #tpu.memory_space<vmem>>, vector<16x32xf32>
    %cst = arith.constant dense<0.000000e+00> : vector<8x32xf32>
    %2 = tpu.matmul %0, %1, %cst {dimension_numbers = #tpu.dot_dimension_numbers<[1], [0], [0], [1], [0, 0, 1, 1], [], []>} : vector<8x16xf32>, vector<16x32xf32>, vector<8x32xf32> -> vector<8x32xf32>
    %c0_3 = arith.constant 0 : index
    %c0_4 = arith.constant 0 : index
    %3 = vector.load %arg4[%c0_3, %c0_4] : memref<1x32xf32, #tpu.memory_space<vmem>>, vector<1x32xf32>
    %4 = vector.broadcast %3 : vector<1x32xf32> to vector<8x32xf32>
    %5 = arith.addf %2, %4 : vector<8x32xf32>
    %cst_5 = arith.constant 0.000000e+00 : f32
    %6 = vector.broadcast %cst_5 : f32 to vector<8x32xf32>
    %7 = arith.maximumf %5, %6 : vector<8x32xf32>
    %c0_6 = arith.constant 0 : index
    %c0_7 = arith.constant 0 : index
    %8 = vector.load %arg5[%c0_6, %c0_7] : memref<8x32xf32, #tpu.memory_space<vmem>>, vector<8x32xf32>
    tpu.vector_store %arg5[%c0_6, %c0_7], %7 {strides = array<i32>} : memref<8x32xf32, #tpu.memory_space<vmem>>, vector<8x32xf32>,
    return
  }
  func.func @transform_0(%arg0: i32, %arg1: i32) -> (i32, i32) {
    %c0_i32 = arith.constant 0 : i32
    %c0_i32_0 = arith.constant 0 : i32
    return %arg0, %c0_i32 : i32, i32
  }
  func.func @transform_1(%arg0: i32, %arg1: i32) -> (i32, i32) {
    %c0_i32 = arith.constant 0 : i32
    %c0_i32_0 = arith.constant 0 : i32
    return %c0_i32, %arg1 : i32, i32
  }
  func.func @transform_2(%arg0: i32, %arg1: i32) -> (i32, i32) {
    %c0_i32 = arith.constant 0 : i32
    %c0_i32_0 = arith.constant 0 : i32
    return %c0_i32, %arg1 : i32, i32
  }
  func.func @transform_3(%arg0: i32, %arg1: i32) -> (i32, i32) {
    %c0_i32 = arith.constant 0 : i32
    return %arg0, %arg1 : i32, i32
  }
}

</mosaic_0001>

<llo_original>
// kernel: tpu_custom_call.1
$region0: #{tpu_custom_call.1}
  #allocation0 [shape = 'u32[]', space=smem, size = 0x4, offset = 0x4, fixed_abs, tag = 'smem constant byte address 0x4 - core index']
  #allocation1 [shape = 'u32[144,128]{1,0:T(1,128)}', space=vmem, size = 0x12000, scoped, tag = 'internal scratch']
  %s0 = inlined_call_operand.hbm [shape: f32[8,16], index: 0, kind: input, shape index: {}]
  %s1 = inlined_call_operand.hbm [shape: f32[16,32], index: 1, kind: input, shape index: {}]
  %s2 = inlined_call_operand.hbm [shape: f32[1,32], index: 2, kind: input, shape index: {}]
  %s3 = inlined_call_operand.hbm [shape: f32[8,32], index: 3, kind: output, shape index: {}]
  %s4 = sld [smem:[#allocation0]]
  $region34: #{tpu_custom_call.1} parent=0
    _
  %s6 = ssub.s32 1, %s4
  %s7 = scalar_select 0, %s6, %s4
  $region1: #{tpu_custom_call.1} parent=0
    #allocation2 [shape = 'u8[4096]{0}', space=vmem, size = 0x1000, scoped, tag = 'input window, operand 0, single buffered']
    #allocation3 [shape = 's32[1]{0}', space=sflag, size = 0x4, scoped, tag = 'scoped memory for tpu_custom_call.1']
    #allocation4 [shape = 's32[1]{0}', space=sflag, size = 0x4, scoped, tag = 'scoped memory for tpu_custom_call.1']
    #allocation5 [shape = 'u8[8192]{0}', space=vmem, size = 0x2000, scoped, tag = 'input window, operand 1, single buffered']
    #allocation6 [shape = 's32[1]{0}', space=sflag, size = 0x4, scoped, tag = 'scoped memory for tpu_custom_call.1']
    #allocation7 [shape = 'u8[512]{0}', space=vmem, size = 0x400, scoped, tag = 'input window, operand 2, single buffered']
    #allocation8 [shape = 'u8[4096]{0}', space=vmem, size = 0x1000, scoped, tag = 'output window, operand 0, single buffered']
    %8 = vsyncpa [#allocation3], 0
    %9 = vsyncpa [#allocation6], 0
    %10 = vsyncpa [#allocation4], 0
    // Predicated region
    $region2: #{tpu_custom_call.1} parent=1 // pred_check
      _
    $region3: #{tpu_custom_call.1} parent=1 // pred_check_branch
      %12 = sbr.rel (0) target = $region5
    $region4: #{tpu_custom_call.1} parent=1 // pred_region
      %s14 = ssub.s32 128, 128
      %15 = vsyncadd [#allocation3], %s14
      %s17 = sshll.u32 [#allocation2], 4
      %s18 = int_to_ptr.vmem [resolvable:$true] %s17
      %20 = dma.hbm_to_vmem [thread:$0]  %s0, 128, %s18, [#allocation3]
    $region5: #{tpu_custom_call.1} parent=1 // pred_fallthru
      _
    // Predicated region
    $region6: #{tpu_custom_call.1} parent=1 // pred_check
      _
    $region7: #{tpu_custom_call.1} parent=1 // pred_check_branch
      %22 = sbr.rel (0) target = $region9
    $region8: #{tpu_custom_call.1} parent=1 // pred_region
      %s24 = ssub.s32 256, 256
      %25 = vsyncadd [#allocation6], %s24
      %s26 = sshll.u32 [#allocation5], 4
      %s27 = int_to_ptr.vmem [resolvable:$true] %s26
      %32 = dma.hbm_to_vmem [thread:$0]  %s1, 256, %s27, [#allocation6], 128, 128, 8
    $region9: #{tpu_custom_call.1} parent=1 // pred_fallthru
      _
    // Predicated region
    $region10: #{tpu_custom_call.1} parent=1 // pred_check
      _
    $region11: #{tpu_custom_call.1} parent=1 // pred_check_branch
      %34 = sbr.rel (0) target = $region13
    $region12: #{tpu_custom_call.1} parent=1 // pred_region
      %s36 = ssub.s32 16, 16
      %37 = vsyncadd [#allocation6], %s36
      %s39 = sshll.u32 [#allocation7], 4
      %s40 = int_to_ptr.vmem [resolvable:$true] %s39
      %42 = dma.hbm_to_vmem [thread:$0]  %s2, 16, %s40, [#allocation6]
    $region13: #{tpu_custom_call.1} parent=1 // pred_fallthru
      _
    // Predicated region
    $region14: #{tpu_custom_call.1} parent=1 // pred_check
      _
    $region15: #{tpu_custom_call.1} parent=1 // pred_check_branch
      %44 = sbr.rel (0) target = $region17
    $region16: #{tpu_custom_call.1} parent=1 // pred_region
      %45 = dma.done [#allocation3], 128
    $region17: #{tpu_custom_call.1} parent=1 // pred_fallthru
      _
    // Predicated region
    $region18: #{tpu_custom_call.1} parent=1 // pred_check
      _
    $region19: #{tpu_custom_call.1} parent=1 // pred_check_branch
      %47 = sbr.rel (0) target = $region21
    $region20: #{tpu_custom_call.1} parent=1 // pred_region
      %48 = dma.done [#allocation6], 256
    $region21: #{tpu_custom_call.1} parent=1 // pred_fallthru
      _
    // Predicated region
    $region22: #{tpu_custom_call.1} parent=1 // pred_check
      _
    $region23: #{tpu_custom_call.1} parent=1 // pred_check_branch
      %50 = sbr.rel (0) target = $region25
    $region24: #{tpu_custom_call.1} parent=1 // pred_region
      %51 = dma.done [#allocation6], 16
    $region25: #{tpu_custom_call.1} parent=1 // pred_fallthru
      _
    %v52 = vld [vmem:[#allocation2] sm:$0xff]
    %v53 = vld [vmem:[#allocation5] sm:$0xff]
    %v54 = vld [vmem:[#allocation5 + $0x8] sm:$0xff]
    %v55 = vld [vmem:[#allocation7] sm:$0x1]
    %v57 = vlaneseq
    %v58 = vshrl.u32 %v57, 7
    %v59 = vsub.s32 0, %v58
    %v60 = vrot.slane %v55, %v59
    %vm62 = vcmask 130048
    %v64 = vsel %vm62, %v52, 0
    %66 = vmatprep.subr.mxu0 0.0
    %67 = vmatpush1.msra.mxu0 %v53
    %68 = vmatprep.subr.mxu0 0.0
    %69 = vmatpush1.msra.mxu0 %v54
    %70 = vmatprep.subr.mxu0 0.0
    %71 = vmatpush1.msra.mxu0 0.0
    %72 = vmatprep.subr.mxu0 0.0
    %73 = vmatpush1.msra.mxu0 0.0
    %74 = vmatprep.subr.mxu0 0.0
    %75 = vmatpush1.msra.mxu0 0.0
    %76 = vmatprep.subr.mxu0 0.0
    %77 = vmatpush1.msra.mxu0 0.0
    %78 = vmatprep.subr.mxu0 0.0
    %79 = vmatpush1.msra.mxu0 0.0
    %80 = vmatprep.subr.mxu0 0.0
    %81 = vmatpush1.msra.mxu0 0.0
    %82 = vmatprep.subr.mxu0 0.0
    %83 = vmatpush1.msra.mxu0 0.0
    %84 = vmatprep.subr.mxu0 0.0
    %85 = vmatpush1.msra.mxu0 0.0
    %86 = vmatprep.subr.mxu0 0.0
    %87 = vmatpush1.msra.mxu0 0.0
    %88 = vmatprep.subr.mxu0 0.0
    %89 = vmatpush1.msra.mxu0 0.0
    %90 = vmatprep.subr.mxu0 0.0
    %91 = vmatpush1.msra.mxu0 0.0
    %92 = vmatprep.subr.mxu0 0.0
    %93 = vmatpush1.msra.mxu0 0.0
    %94 = vmatprep.subr.mxu0 0.0
    %95 = vmatpush1.msra.mxu0 0.0
    %96 = vmatprep.subr.mxu0 0.0
    %97 = vmatpush1.msra.mxu0 0.0
    %98 = vmatprep.subr.mxu0 0.0
    %99 = vmatpush1.msra.mxu0 0.0
    %100 = vmatprep.subr.mxu0 0.0
    %101 = vmatpush1.msra.mxu0 0.0
    %102 = vmatprep.subr.mxu0 0.0
    %103 = vmatpush1.msra.mxu0 0.0
    %104 = vmatprep.subr.mxu0 0.0
    %105 = vmatpush1.msra.mxu0 0.0
    %106 = vmatprep.subr.mxu0 0.0
    %107 = vmatpush1.msra.mxu0 0.0
    %108 = vmatprep.subr.mxu0 0.0
    %109 = vmatpush1.msra.mxu0 0.0
    %110 = vmatprep.subr.mxu0 0.0
    %111 = vmatpush1.msra.mxu0 0.0
    %112 = vmatprep.subr.mxu0 0.0
    %113 = vmatpush1.msra.mxu0 0.0
    %114 = vmatprep.subr.mxu0 0.0
    %115 = vmatpush1.msra.mxu0 0.0
    %116 = vmatprep.subr.mxu0 0.0
    %117 = vmatpush1.msra.mxu0 0.0
    %118 = vmatprep.subr.mxu0 0.0
    %119 = vmatpush1.msra.mxu0 0.0
    %120 = vmatprep.subr.mxu0 0.0
    %121 = vmatpush1.msra.mxu0 0.0
    %122 = vmatprep.subr.mxu0 0.0
    %123 = vmatpush1.msra.mxu0 0.0
    %124 = vmatprep.subr.mxu0 0.0
    %125 = vmatpush1.msra.mxu0 0.0
    %126 = vmatprep.subr.mxu0 0.0
    %127 = vmatpush1.msra.mxu0 0.0
    %128 = vmatprep.subr.mxu0 0.0
    %129 = vmatpush1.msra.mxu0 0.0
    %130 = vmatprep.mubr.f32.mxu0 0.0
    %131 = vmatmul.mubr.f32.gmra.mrb[0].mxu0 %v64
    %v132 = vpop.f32.mrb[0].mxu0
    %v133 = vadd.f32 %v60, %v132
    %v134 = vpop.f32.mrb[0].mxu0
    %135 = vdwg.mxu0
    %v136 = vmax.f32 %v133, 0.0
    %vm137 = vcmask 261120
    %138 = vst.msk [vmem:[#allocation8] sm:$0xff] %vm137, %v136
    // Predicated region
    $region26: #{tpu_custom_call.1} parent=1 // pred_check
      _
    $region27: #{tpu_custom_call.1} parent=1 // pred_check_branch
      %140 = sbr.rel (0) target = $region29
    $region28: #{tpu_custom_call.1} parent=1 // pred_region
      %s142 = ssub.s32 128, 128
      %143 = vsyncadd [#allocation4], %s142
      %s145 = sshll.u32 [#allocation8], 4
      %s146 = int_to_ptr.vmem [resolvable:$true] %s145
      %148 = dma.vmem_to_hbm [thread:$0]  %s146, 128, %s3, [#allocation4]
    $region29: #{tpu_custom_call.1} parent=1 // pred_fallthru
      _
    // Predicated region
    $region30: #{tpu_custom_call.1} parent=1 // pred_check
      _
    $region31: #{tpu_custom_call.1} parent=1 // pred_check_branch
      %150 = sbr.rel (0) target = $region33
    $region32: #{tpu_custom_call.1} parent=1 // pred_region
      %151 = dma.done [#allocation4], 128
    $region33: #{tpu_custom_call.1} parent=1 // pred_fallthru
      _
    %152 = vsyncpa [#allocation3], 1
    %153 = vsyncpa [#allocation6], 1
    %154 = vsyncpa [#allocation4], 1

</llo_original>
